<compile_context>
chip_gen: v5e
topology: v5e:2x2
jax: 0.10.0
libtpu: 0.0.40
codegen_flags: <defaults>
</compile_context>

<pallas_src>
import jax
import jax.numpy as jnp
from jax import lax
from jax.experimental import pallas as pl
from jax.experimental.pallas import tpu as pltpu

KH = KW = 3
STRIDE = 1
PAD = 1
BN_EPS = 1e-5
LRELU_SLOPE = 0.1


# ----------------------------------------------------------------------------
# Kernel 1: im2col conv for one (batch element, output-row tile).
#   grid = (N, num_row_tiles), both "parallel".
#   Also emits per-tile per-channel [sum, sum_of_squares] for BatchNorm.
# ----------------------------------------------------------------------------
def conv_im2col_kernel(xp_ref, w2_ref, y_ref, stats_ref):
    # xp_ref:    (1, Hp, Wp, IC)  f32   padded NHWC input, one batch element
    # w2_ref:    (KH*KW*IC, OC)   bf16  im2col-reshaped weight
    # y_ref:     (1, OC, TH*W)    bf16  conv output tile, channel-major (lane-dense)
    # stats_ref: (1, 1, 2, OC)    f32   [sum, sum_sq] over this tile
    _, OC, THW = y_ref.shape
    IC = xp_ref.shape[-1]
    Wp = xp_ref.shape[2]
    W = Wp - 2 * PAD
    TH = THW // W

    ht = pl.program_id(1)
    h0 = pl.multiple_of(ht * TH, TH)

    # Padded input rows needed for output rows [h0, h0+TH): rows [h0, h0+TH+2).
    xwin = xp_ref[0, pl.ds(h0, TH + KH - 1)]            # (TH+2, Wp, IC) f32

    # Build the im2col patch matrix: concat the 9 shifted windows along the
    # channel (lane) axis -> one matmul with K = KH*KW*IC.
    taps = []
    for kh in range(KH):
        for kw in range(KW):
            t = xwin[kh:kh + TH, kw:kw + W, :]          # (TH, W, IC) static slice
            taps.append(t.reshape(TH * W, IC))          # collapse leading dims
    patches = jnp.concatenate(taps, axis=1)             # (TH*W, KH*KW*IC) f32

    acc = jnp.dot(patches.astype(jnp.bfloat16), w2_ref[...],
                  preferred_element_type=jnp.float32)   # (TH*W, OC) f32

    # Per-channel partial BatchNorm statistics from the f32 accumulator.
    s1 = jnp.sum(acc, axis=0, keepdims=True)            # (1, OC)
    s2 = jnp.sum(acc * acc, axis=0, keepdims=True)      # (1, OC)
    stats_ref[0, 0] = jnp.concatenate([s1, s2], axis=0)  # (2, OC)

    # Lane-dense store: channel-major (OC, TH*W) == NCHW-flat layout.
    y_ref[0] = jnp.transpose(acc).astype(y_ref.dtype)


# ----------------------------------------------------------------------------
# Kernel 2: fused BatchNorm affine (pre-folded scale/shift) + LeakyReLU(0.1).
#   grid = (N, num_spatial_tiles), both "parallel"; pure tiled elementwise pass.
# ----------------------------------------------------------------------------
def bn_lrelu_kernel(y_ref, scale_ref, shift_ref, o_ref):
    # y_ref: (1, OC, TS) bf16; scale/shift: (OC, 1) f32; o_ref: (1, OC, TS) f32
    y = y_ref[0].astype(jnp.float32)                     # (OC, TS)
    z = y * scale_ref[...] + shift_ref[...]              # single mul+add per elem
    o_ref[0] = jnp.where(z > 0, z, LRELU_SLOPE * z).astype(o_ref.dtype)


# ----------------------------------------------------------------------------
# Wrapper.
# ----------------------------------------------------------------------------
def cnn_block(x_nchw, w_oihw, gamma, beta):
    N, IC, H, W = x_nchw.shape
    OC = w_oihw.shape[0]
    Ho = (H + 2 * PAD - KH) // STRIDE + 1
    Wo = (W + 2 * PAD - KW) // STRIDE + 1
    HW = Ho * Wo

    # Row-tile: smallest divisor of Ho whose flattened tile (TH*Wo) is >= 128
    # lanes (lane-dense stores); fall back to the full height for tiny images.
    TH = Ho
    for cand in range(1, Ho + 1):
        if Ho % cand == 0 and cand * Wo >= 128:
            TH = cand
            break
    num_ht = Ho // TH
    THW = TH * Wo

    # Input prep: one small fused XLA pass (NCHW -> NHWC + spatial zero-pad).
    # In a chained NHWC network this transpose disappears; the output side of
    # this block needs no transpose at all (produced directly in NCHW-flat).
    # TODO(synk): for very large images, row-tile the *input* with a 2-row halo
    # (manual DMA) instead of staging the full padded image per batch element.
    x_nhwc = jnp.transpose(x_nchw, (0, 2, 3, 1)).astype(jnp.float32)
    x_pad = jnp.pad(x_nhwc, ((0, 0), (PAD, PAD), (PAD, PAD), (0, 0)))
    Hp, Wp = H + 2 * PAD, W + 2 * PAD

    # im2col weight: OIHW -> (KH*KW*IC, OC), column order (kh, kw, c), bf16.
    K = KH * KW * IC
    w2 = jnp.transpose(w_oihw, (2, 3, 1, 0)).reshape(K, OC).astype(jnp.bfloat16)

    conv_out, stats = pl.pallas_call(
        conv_im2col_kernel,
        out_shape=(
            jax.ShapeDtypeStruct((N, OC, HW), jnp.bfloat16),      # NCHW-flat
            jax.ShapeDtypeStruct((N, num_ht, 2, OC), jnp.float32),  # partial stats
        ),
        grid=(N, num_ht),
        in_specs=[
            pl.BlockSpec((1, Hp, Wp, IC), lambda n, t: (n, 0, 0, 0)),
            pl.BlockSpec((K, OC), lambda n, t: (0, 0)),
        ],
        out_specs=(
            pl.BlockSpec((1, OC, THW), lambda n, t: (n, 0, t)),
            pl.BlockSpec((1, 1, 2, OC), lambda n, t: (n, t, 0, 0)),
        ),
        compiler_params=pltpu.CompilerParams(
            dimension_semantics=("parallel", "parallel"),
            vmem_limit_bytes=64 * 1024 * 1024),
    )(x_pad, w2)

    # Tiny per-channel reduction + BN coefficient fold (plain XLA, O(OC) work).
    count = float(N * HW)
    s = jnp.sum(stats, axis=(0, 1))                      # (2, OC)
    mean = s[0] / count
    var = jnp.maximum(s[1] / count - mean * mean, 0.0)   # biased variance
    inv_std = lax.rsqrt(var + BN_EPS)
    scale_c = gamma.astype(jnp.float32) * inv_std        # (OC,)
    shift_c = beta.astype(jnp.float32) - mean * scale_c  # (OC,)
    scale = scale_c.reshape(OC, 1)
    shift = shift_c.reshape(OC, 1)

    TS = THW                                             # spatial tile for pass 2
    num_s = HW // TS
    out_flat = pl.pallas_call(
        bn_lrelu_kernel,
        out_shape=jax.ShapeDtypeStruct((N, OC, HW), jnp.float32),
        grid=(N, num_s),
        in_specs=[
            pl.BlockSpec((1, OC, TS), lambda n, t: (n, 0, t)),
            pl.BlockSpec((OC, 1), lambda n, t: (0, 0)),
            pl.BlockSpec((OC, 1), lambda n, t: (0, 0)),
        ],
        out_specs=pl.BlockSpec((1, OC, TS), lambda n, t: (n, 0, t)),
        compiler_params=pltpu.CompilerParams(
            dimension_semantics=("parallel", "parallel"),
            vmem_limit_bytes=64 * 1024 * 1024),
    )(conv_out, scale, shift)

    return out_flat.reshape(N, OC, Ho, Wo)               # free reshape: NCHW


# ----------------------------------------------------------------------------
# Pure-JAX f32 reference (mirrors the PyTorch forward) for correctness checking.
# ----------------------------------------------------------------------------
def reference(x_nchw, w_oihw, gamma, beta):
    y = lax.conv_general_dilated(
        x_nchw, w_oihw, window_strides=(STRIDE, STRIDE),
        padding=((PAD, PAD), (PAD, PAD)),
        dimension_numbers=("NCHW", "OIHW", "NCHW"))
    mean = jnp.mean(y, axis=(0, 2, 3), keepdims=True)
    var = jnp.mean((y - mean) ** 2, axis=(0, 2, 3), keepdims=True)
    yhat = ((y - mean) / jnp.sqrt(var + BN_EPS)
            * gamma.reshape(1, -1, 1, 1) + beta.reshape(1, -1, 1, 1))
    return jnp.where(yhat > 0, yhat, LRELU_SLOPE * yhat)


if __name__ == "__main__":
    key = jax.random.PRNGKey(0)
    k1, k2, k3, k4 = jax.random.split(key, 4)

    N, IC, OC, HW = 2, 4, 8, 16
    x = jax.random.normal(k1, (N, IC, HW, HW), jnp.float32)
    w = jax.random.normal(k2, (OC, IC, KH, KW), jnp.float32) * 0.1
    gamma = 1.0 + 0.1 * jax.random.normal(k3, (OC,), jnp.float32)
    beta = 0.1 * jax.random.normal(k4, (OC,), jnp.float32)

    out = cnn_block(x, w, gamma, beta)
    out = jax.block_until_ready(out)

    ref = reference(x, w, gamma, beta)
    assert out.shape == ref.shape == (N, OC, HW, HW)
    # Tolerance accounts for the bf16 MXU operands / bf16 conv->BN intermediate
    # (review-requested); stats are accumulated in f32.
    assert jnp.allclose(out, ref, atol=5e-2, rtol=5e-2), (
        f"max abs err = {jnp.max(jnp.abs(out - ref))}")

    print("KERNEL_OK")
</pallas_src>

<mosaic_0001>
module attributes {stable_mosaic.version = 11 : i64} {
  func.func @conv_im2col_kernel(%arg0: i32, %arg1: i32, %arg2: memref<1x18x18x4xf32, #tpu.memory_space<vmem>>, %arg3: memref<36x8xbf16, #tpu.memory_space<vmem>>, %arg4: memref<1x8x128xbf16, #tpu.memory_space<vmem>>, %arg5: memref<1x1x2x8xf32, #tpu.memory_space<vmem>>) attributes {dimension_semantics = [#tpu.dimension_semantics<parallel>, #tpu.dimension_semantics<parallel>], iteration_bounds = array<i64: 2, 2>, scalar_prefetch = 0 : i64, scratch_operands = 0 : i64, tpu.core_type = #tpu.core_type<tc>, window_params = [{transform_indices = @transform_0, window_bounds = array<i64: 1, 18, 18, 4>}, {pipeline_mode = #tpu.pipeline_mode<synchronous>, transform_indices = @transform_1, window_bounds = array<i64: 36, 8>}, {transform_indices = @transform_2, window_bounds = array<i64: 1, 8, 128>}, {transform_indices = @transform_3, window_bounds = array<i64: 1, 1, 2, 8>}]} {
    %c8_i32 = arith.constant 8 : i32
    %0 = arith.muli %arg1, %c8_i32 : i32
    %1 = tpu.assume_multiple %0, 8 : i32
    %c0 = arith.constant 0 : index
    %2 = arith.index_cast %1 : i32 to index
    %c0_0 = arith.constant 0 : index
    %c0_1 = arith.constant 0 : index
    %3 = vector.load %arg2[%c0, %2, %c0_0, %c0_1] : memref<1x18x18x4xf32, #tpu.memory_space<vmem>>, vector<1x10x18x4xf32>
    %4 = vector.shape_cast %3 : vector<1x10x18x4xf32> to vector<10x18x4xf32>
    %5 = vector.extract_strided_slice %4 {offsets = [0, 0, 0], sizes = [8, 16, 4], strides = [1, 1, 1]} : vector<10x18x4xf32> to vector<8x16x4xf32>
    %6 = vector.shape_cast %5 : vector<8x16x4xf32> to vector<128x4xf32>
    %7 = vector.extract_strided_slice %4 {offsets = [0, 1, 0], sizes = [8, 16, 4], strides = [1, 1, 1]} : vector<10x18x4xf32> to vector<8x16x4xf32>
    %8 = vector.shape_cast %7 : vector<8x16x4xf32> to vector<128x4xf32>
    %9 = vector.extract_strided_slice %4 {offsets = [0, 2, 0], sizes = [8, 16, 4], strides = [1, 1, 1]} : vector<10x18x4xf32> to vector<8x16x4xf32>
    %10 = vector.shape_cast %9 : vector<8x16x4xf32> to vector<128x4xf32>
    %11 = vector.extract_strided_slice %4 {offsets = [1, 0, 0], sizes = [8, 16, 4], strides = [1, 1, 1]} : vector<10x18x4xf32> to vector<8x16x4xf32>
    %12 = vector.shape_cast %11 : vector<8x16x4xf32> to vector<128x4xf32>
    %13 = vector.extract_strided_slice %4 {offsets = [1, 1, 0], sizes = [8, 16, 4], strides = [1, 1, 1]} : vector<10x18x4xf32> to vector<8x16x4xf32>
    %14 = vector.shape_cast %13 : vector<8x16x4xf32> to vector<128x4xf32>
    %15 = vector.extract_strided_slice %4 {offsets = [1, 2, 0], sizes = [8, 16, 4], strides = [1, 1, 1]} : vector<10x18x4xf32> to vector<8x16x4xf32>
    %16 = vector.shape_cast %15 : vector<8x16x4xf32> to vector<128x4xf32>
    %17 = vector.extract_strided_slice %4 {offsets = [2, 0, 0], sizes = [8, 16, 4], strides = [1, 1, 1]} : vector<10x18x4xf32> to vector<8x16x4xf32>
    %18 = vector.shape_cast %17 : vector<8x16x4xf32> to vector<128x4xf32>
    %19 = vector.extract_strided_slice %4 {offsets = [2, 1, 0], sizes = [8, 16, 4], strides = [1, 1, 1]} : vector<10x18x4xf32> to vector<8x16x4xf32>
    %20 = vector.shape_cast %19 : vector<8x16x4xf32> to vector<128x4xf32>
    %21 = vector.extract_strided_slice %4 {offsets = [2, 2, 0], sizes = [8, 16, 4], strides = [1, 1, 1]} : vector<10x18x4xf32> to vector<8x16x4xf32>
    %22 = vector.shape_cast %21 : vector<8x16x4xf32> to vector<128x4xf32>
    %23 = tpu.concatenate %6, %8, %10, %12, %14, %16, %18, %20, %22 in 1 : vector<128x4xf32>, vector<128x4xf32>, vector<128x4xf32>, vector<128x4xf32>, vector<128x4xf32>, vector<128x4xf32>, vector<128x4xf32>, vector<128x4xf32>, vector<128x4xf32> -> vector<128x36xf32>
    %24 = arith.truncf %23 : vector<128x36xf32> to vector<128x36xbf16>
    %c0_2 = arith.constant 0 : index
    %c0_3 = arith.constant 0 : index
    %25 = vector.load %arg3[%c0_2, %c0_3] : memref<36x8xbf16, #tpu.memory_space<vmem>>, vector<36x8xbf16>
    %cst = arith.constant dense<0.000000e+00> : vector<128x8xf32>
    %26 = tpu.matmul %24, %25, %cst {dimension_numbers = #tpu.dot_dimension_numbers<[1], [0], [0], [1], [0, 0, 1, 1], [], []>} : vector<128x36xbf16>, vector<36x8xbf16>, vector<128x8xf32> -> vector<128x8xf32>
    %cst_4 = arith.constant dense<0.000000e+00> : vector<8xf32>
    %27 = vector.multi_reduction <add>, %26, %cst_4 [0] : vector<128x8xf32> to vector<8xf32>
    %28 = vector.shape_cast %27 : vector<8xf32> to vector<1x8xf32>
    %29 = arith.mulf %26, %26 : vector<128x8xf32>
    %cst_5 = arith.constant dense<0.000000e+00> : vector<8xf32>
    %30 = vector.multi_reduction <add>, %29, %cst_5 [0] : vector<128x8xf32> to vector<8xf32>
    %31 = vector.shape_cast %30 : vector<8xf32> to vector<1x8xf32>
    %32 = tpu.concatenate %28, %31 in 0 : vector<1x8xf32>, vector<1x8xf32> -> vector<2x8xf32>
    %c0_6 = arith.constant 0 : index
    %c0_7 = arith.constant 0 : index
    %c0_8 = arith.constant 0 : index
    %c0_9 = arith.constant 0 : index
    %33 = vector.load %arg5[%c0_6, %c0_7, %c0_8, %c0_9] : memref<1x1x2x8xf32, #tpu.memory_space<vmem>>, vector<1x1x2x8xf32>
    %34 = vector.shape_cast %33 : vector<1x1x2x8xf32> to vector<2x8xf32>
    %35 = vector.shape_cast %32 : vector<2x8xf32> to vector<1x1x2x8xf32>
    tpu.vector_store %arg5[%c0_6, %c0_7, %c0_8, %c0_9], %35 {strides = array<i32>} : memref<1x1x2x8xf32, #tpu.memory_space<vmem>>, vector<1x1x2x8xf32>,
    %36 = tpu.transpose %26, [1, 0] : vector<128x8xf32> -> vector<8x128xf32>
    %37 = arith.truncf %36 : vector<8x128xf32> to vector<8x128xbf16>
    %c0_10 = arith.constant 0 : index
    %c0_11 = arith.constant 0 : index
    %c0_12 = arith.constant 0 : index
    %38 = vector.load %arg4[%c0_10, %c0_11, %c0_12] : memref<1x8x128xbf16, #tpu.memory_space<vmem>>, vector<1x8x128xbf16>
    %39 = vector.shape_cast %38 : vector<1x8x128xbf16> to vector<8x128xbf16>
    %40 = vector.shape_cast %37 : vector<8x128xbf16> to vector<1x8x128xbf16>
    tpu.vector_store %arg4[%c0_10, %c0_11, %c0_12], %40 {strides = array<i32>} : memref<1x8x128xbf16, #tpu.memory_space<vmem>>, vector<1x8x128xbf16>,
    return
  }
  func.func @transform_0(%arg0: i32, %arg1: i32) -> (i32, i32, i32, i32) {
    %c0_i32 = arith.constant 0 : i32
    %c0_i32_0 = arith.constant 0 : i32
    %c0_i32_1 = arith.constant 0 : i32
    %c0_i32_2 = arith.constant 0 : i32
    return %arg0, %c0_i32, %c0_i32_0, %c0_i32_1 : i32, i32, i32, i32
  }
  func.func @transform_1(%arg0: i32, %arg1: i32) -> (i32, i32) {
    %c0_i32 = arith.constant 0 : i32
    %c0_i32_0 = arith.constant 0 : i32
    %c0_i32_1 = arith.constant 0 : i32
    return %c0_i32, %c0_i32_0 : i32, i32
  }
  func.func @transform_2(%arg0: i32, %arg1: i32) -> (i32, i32, i32) {
    %c0_i32 = arith.constant 0 : i32
    %c0_i32_0 = arith.constant 0 : i32
    return %arg0, %c0_i32, %arg1 : i32, i32, i32
  }
  func.func @transform_3(%arg0: i32, %arg1: i32) -> (i32, i32, i32, i32) {
    %c0_i32 = arith.constant 0 : i32
    %c0_i32_0 = arith.constant 0 : i32
    %c0_i32_1 = arith.constant 0 : i32
    return %arg0, %arg1, %c0_i32, %c0_i32_0 : i32, i32, i32, i32
  }
}

</mosaic_0001>

<llo_original>
// kernel: tpu_custom_call.1
$region0: #{tpu_custom_call.1}
  #allocation0 [shape = 'u32[]', space=smem, size = 0x4, offset = 0x4, fixed_abs, tag = 'smem constant byte address 0x4 - core index']
  #allocation1 [shape = 'u32[72,128]{1,0:T(1,128)}', space=vmem, size = 0x9000, scoped, tag = 'internal scratch']
  %s0 = inlined_call_operand.vmem [shape: f32[2,18,18,4], index: 0, kind: input, shape index: {}]
  %s1 = inlined_call_operand.vmem [shape: bf16[36,8], index: 1, kind: input, shape index: {}]
  %s2 = inlined_call_operand.hbm [shape: bf16[2,8,256], index: 2, kind: output, shape index: {0}]
  %s3 = inlined_call_operand.hbm [shape: f32[2,2,2,8], index: 3, kind: output, shape index: {1}]
  %4 = xla_tuple %s2, %s3
  %s5 = sld [smem:[#allocation0]]
  $region49: #{tpu_custom_call.1} parent=0
    _
  %s7 = ssub.s32 1, %s5
  %s8 = scalar_select 0, %s7, %s5
  $region1: #{tpu_custom_call.1} parent=0
    #allocation2 [shape = 'u8[4096]{0}', space=vmem, size = 0x1000, scoped, tag = 'output window, operand 0']
    #allocation3 [shape = 's32[2]{0}', space=sflag, size = 0x8, scoped, tag = 'scoped memory for tpu_custom_call.1']
    #allocation4 [shape = 'u8[2048]{0}', space=vmem, size = 0x800, scoped, tag = 'output window, operand 1']
    #allocation5 [shape = 's32[2]{0}', space=sflag, size = 0x8, scoped, tag = 'scoped memory for tpu_custom_call.1']
    %9 = vsyncpa [#allocation3], 0
    %s10 = scalar_lea.sflag [#allocation3], 1
    %11 = vsyncpa %s10, 0
    %12 = vsyncpa [#allocation5], 0
    %s13 = scalar_lea.sflag [#allocation5], 1
    %14 = vsyncpa %s13, 0
    loop: start=0, step=1, limit=6
    $region2: #{tpu_custom_call.1} parent=1 // loop_pre_header
      _
    $region3: #{tpu_custom_call.1} parent=1 // loop_header
      %s16 = sphi 0, %s20
      %p17 = scmp.ge.s32.totalorder %s16, 6
      %s23 = sphi 0, %s35
      %s24 = sphi 0, %s31
      %s25 = sphi 0, %s23
      %s26 = sphi 0, %s24
      %s27 = sphi 0, %s25
      %s28 = sphi 0, %s26
      %s38 = sphi 0, %s40
      %s41 = sphi 0, %s38
      %s42 = sphi 0, %s41
      %s58 = sphi 0, %s42
      %s62 = sphi 0, %s62
      %s64 = sphi 0, %s62
      %s65 = sphi 0, %s64
      %s79 = sphi 0, %s65
      %s87 = sphi 0, %s89
      %s90 = sphi 0, %s87
      %s91 = sphi 0, %s90
      %s107 = sphi 0, %s91
      %s115 = sphi 0, %s117
      %s118 = sphi 0, %s115
      %s119 = sphi 0, %s118
      %s135 = sphi 0, %s119
    $region4: #{tpu_custom_call.1} parent=1 // loop_header_branch
      %19 = sbr.rel (%p17) target = $region8
    $region5: #{tpu_custom_call.1} parent=1 // loop_body
      %s21 = ssub.s32 %s16, 1
      %s22 = ssub.s32 %s16, 2
      %s29 = sadd.s32 1, %s24
      %p30 = scmp.ge.s32.totalorder %s29, 2
      %s31 = scalar_select %p30, 0, %s29
      %s32 = sadd.s32 1, %s23
      %s33 = scalar_select %p30, %s32, %s23
      %p34 = scmp.ge.s32.totalorder %s33, 2
      %s35 = scalar_select %p34, 0, %s33
      %s36 = ssub.s32 %s23, %s35
      %p37 = scmp.eq.s32.totalorder %s36, 0
      %s39 = sadd.s32 %s38, 1
      %s40 = scalar_select %p37, %s38, %s39
      %p43 = pneg %p37
      %p44 = scmp.eq.s32.totalorder %s16, 3
      %p45 = por %p43, %p44
      %p46 = scmp.ne.s32.totalorder %s38, %s41
      %p47 = scmp.eq.s32.totalorder %s16, 0
      %p48 = por %p46, %p47
      %p49 = scmp.ne.s32.totalorder %s38, %s41
      %p50 = scmp.eq.s32.totalorder %s21, 3
      %p51 = por %p49, %p50
      %p52 = scmp.ne.s32.totalorder %s41, %s42
      %p53 = scmp.eq.s32.totalorder %s21, 0
      %p54 = por %p52, %p53
      %p55 = scmp.ne.s32.totalorder %s41, %s42
      %p56 = scmp.eq.s32.totalorder %s22, 3
      %p57 = por %p55, %p56
      %p59 = scmp.ne.s32.totalorder %s42, %s58
      %p60 = scmp.eq.s32.totalorder %s22, 0
      %p61 = por %p59, %p60
      %s63 = sadd.s32 %s62, 1
      %p66 = scmp.eq.s32.totalorder %s16, 3
      %p67 = scmp.ne.s32.totalorder %s62, %s64
      %p68 = scmp.eq.s32.totalorder %s16, 0
      %p69 = por %p67, %p68
      %p70 = scmp.ne.s32.totalorder %s62, %s64
      %p71 = scmp.eq.s32.totalorder %s21, 3
      %p72 = por %p70, %p71
      %p73 = scmp.ne.s32.totalorder %s64, %s65
      %p74 = scmp.eq.s32.totalorder %s21, 0
      %p75 = por %p73, %p74
      %p76 = scmp.ne.s32.totalorder %s64, %s65
      %p77 = scmp.eq.s32.totalorder %s22, 3
      %p78 = por %p76, %p77
      %p80 = scmp.ne.s32.totalorder %s65, %s79
      %p81 = scmp.eq.s32.totalorder %s22, 0
      %p82 = por %p80, %p81
      %s83 = ssub.s32 %s23, %s35
      %s84 = ssub.s32 %s24, %s31
      %s85 = sor.u32 %s83, %s84
      %p86 = scmp.eq.s32.totalorder %s85, 0
      %s88 = sadd.s32 %s87, 1
      %s89 = scalar_select %p86, %s87, %s88
      %p92 = pneg %p86
      %p93 = scmp.eq.s32.totalorder %s16, 3
      %p94 = por %p92, %p93
      %p95 = scmp.ne.s32.totalorder %s87, %s90
      %p96 = scmp.eq.s32.totalorder %s16, 0
      %p97 = por %p95, %p96
      %p98 = scmp.ne.s32.totalorder %s87, %s90
      %p99 = scmp.eq.s32.totalorder %s21, 3
      %p100 = por %p98, %p99
      %p101 = scmp.ne.s32.totalorder %s90, %s91
      %p102 = scmp.eq.s32.totalorder %s21, 0
      %p103 = por %p101, %p102
      %p104 = scmp.ne.s32.totalorder %s90, %s91
      %p105 = scmp.eq.s32.totalorder %s22, 3
      %p106 = por %p104, %p105
      %p108 = scmp.ne.s32.totalorder %s91, %s107
      %p109 = scmp.eq.s32.totalorder %s22, 0
      %p110 = por %p108, %p109
      %s111 = ssub.s32 %s23, %s35
      %s112 = ssub.s32 %s24, %s31
      %s113 = sor.u32 %s111, %s112
      %p114 = scmp.eq.s32.totalorder %s113, 0
      %s116 = sadd.s32 %s115, 1
      %s117 = scalar_select %p114, %s115, %s116
      %p120 = pneg %p114
      %p121 = scmp.eq.s32.totalorder %s16, 3
      %p122 = por %p120, %p121
      %p123 = scmp.ne.s32.totalorder %s115, %s118
      %p124 = scmp.eq.s32.totalorder %s16, 0
      %p125 = por %p123, %p124
      %p126 = scmp.ne.s32.totalorder %s115, %s118
      %p127 = scmp.eq.s32.totalorder %s21, 3
      %p128 = por %p126, %p127
      %p129 = scmp.ne.s32.totalorder %s118, %s119
      %p130 = scmp.eq.s32.totalorder %s21, 0
      %p131 = por %p129, %p130
      %p132 = scmp.ne.s32.totalorder %s118, %s119
      %p133 = scmp.eq.s32.totalorder %s22, 3
      %p134 = por %p132, %p133
      %p136 = scmp.ne.s32.totalorder %s119, %s135
      %p137 = scmp.eq.s32.totalorder %s22, 0
      %p138 = por %p136, %p137
      %p139 = scmp.le.s32.totalorder 1, %s16
      %p140 = scmp.lt.s32.totalorder %s16, 5
      %p141 = pnand %p139, %p140
      %p142 = pneg %p141
      // Predicated region
      $region9: #{tpu_custom_call.1} parent=5 // pred_check
        _
      $region10: #{tpu_custom_call.1} parent=5 // pred_check_branch
        %144 = sbr.rel (%p141) target = $region12
      $region11: #{tpu_custom_call.1} parent=5 // pred_region
        %s145 = ssub.s32 %s16, 1
        // Predicated region
        $region13: #{tpu_custom_call.1} parent=11 // pred_check
          %p146 = pneg %p75
        $region14: #{tpu_custom_call.1} parent=11 // pred_check_branch
          %148 = sbr.rel (%p146) target = $region16
        $region15: #{tpu_custom_call.1} parent=11 // pred_region
          _
        $region16: #{tpu_custom_call.1} parent=11 // pred_fallthru
          _
      $region12: #{tpu_custom_call.1} parent=5 // pred_fallthru
        _
      %p149 = scmp.lt.s32.totalorder %s16, 4
      // Predicated region
      $region17: #{tpu_custom_call.1} parent=5 // pred_check
        %p150 = pneg %p149
      $region18: #{tpu_custom_call.1} parent=5 // pred_check_branch
        %152 = sbr.rel (%p150) target = $region20
      $region19: #{tpu_custom_call.1} parent=5 // pred_region
        // Predicated region
        $region21: #{tpu_custom_call.1} parent=19 // pred_check
          %p153 = pneg %p48
        $region22: #{tpu_custom_call.1} parent=19 // pred_check_branch
          %155 = sbr.rel (%p153) target = $region24
        $region23: #{tpu_custom_call.1} parent=19 // pred_region
          %p156 = scmp.lt.s32.totalorder %s23, 1
          %s157 = scalar_select %p156, %s23, 1
          %s158 = smul.addr %s157, 54
          %s159 = smul.addr %s158, 8
          %s160 = scalar_lea.vmem %s0, %s159
        $region24: #{tpu_custom_call.1} parent=19 // pred_fallthru
          _
      $region20: #{tpu_custom_call.1} parent=5 // pred_fallthru
        _
      %p161 = scmp.le.s32.totalorder 1, %s16
      %p162 = scmp.lt.s32.totalorder %s16, 5
      %p163 = pnand %p161, %p162
      %p164 = pneg %p163
      // Predicated region
      $region25: #{tpu_custom_call.1} parent=5 // pred_check
        _
      $region26: #{tpu_custom_call.1} parent=5 // pred_check_branch
        %166 = sbr.rel (%p163) target = $region28
      $region27: #{tpu_custom_call.1} parent=5 // pred_region
        %s167 = ssub.s32 %s16, 1
        %p168 = scmp.lt.s32.totalorder %s25, 1
        %s169 = scalar_select %p168, %s25, 1
        %s170 = smul.addr %s169, 54
        %s171 = smul.addr %s170, 8
        %s172 = scalar_lea.vmem %s0, %s171
        %p173 = pneg %p54
        %p174 = pneg %p51
        %p175 = pneg %p75
        %p176 = pneg %p72
        %p177 = pneg %p103
        %p178 = pneg %p100
        %s179 = sand.u32 %s90, 1
        %s180 = scalar_lea.sflag [#allocation3], %s179
        %s181 = sand.u32 %s90, 1
        %s182 = smul.addr %s181, 4
        %s183 = scalar_lea.vmem [#allocation2], %s182
        %p184 = pneg %p131
        %p185 = pneg %p128
        %s186 = sand.u32 %s118, 1
        %s187 = scalar_lea.sflag [#allocation5], %s186
        %s188 = sand.u32 %s118, 1
        %s189 = smul.addr %s188, 2
        %s190 = scalar_lea.vmem [#allocation4], %s189
        %p191 = scmp.lt.s32.totalorder %s25, 1
        %s192 = scalar_select %p191, %s25, 1
        %s193 = smul.addr %s192, 54
        %s194 = smul.addr %s193, 8
        %s195 = scalar_lea.vmem %s0, %s194
        %s197 = smul.u32 %s26, 8
        %s198 = smul.u32 %s197, 24
        %s199 = scalar_lea.vmem %s195, %s198
        %v200 = vld [vmem:[%s199] sm:$0xff]
        %v201 = vld [vmem:[%s199 + $0x8] sm:$0xff]
        %v202 = vld [vmem:[%s199 + $0x10] sm:$0x3]
        %v203 = vld [vmem:[%s199 + $0x18] sm:$0xff]
        %v204 = vld [vmem:[%s199 + $0x20] sm:$0xff]
        %v205 = vld [vmem:[%s199 + $0x28] sm:$0x3]
        %v206 = vld [vmem:[%s199 + $0x30] sm:$0xff]
        %v207 = vld [vmem:[%s199 + $0x38] sm:$0xff]
        %v208 = vld [vmem:[%s199 + $0x40] sm:$0x3]
        %v209 = vld [vmem:[%s199 + $0x48] sm:$0xff]
        %v210 = vld [vmem:[%s199 + $0x50] sm:$0xff]
        %v211 = vld [vmem:[%s199 + $0x58] sm:$0x3]
        %v212 = vld [vmem:[%s199 + $0x60] sm:$0xff]
        %v213 = vld [vmem:[%s199 + $0x68] sm:$0xff]
        %v214 = vld [vmem:[%s199 + $0x70] sm:$0x3]
        %v215 = vld [vmem:[%s199 + $0x78] sm:$0xff]
        %v216 = vld [vmem:[%s199 + $0x80] sm:$0xff]
        %v217 = vld [vmem:[%s199 + $0x88] sm:$0x3]
        %v218 = vld [vmem:[%s199 + $0x90] sm:$0xff]
        %v219 = vld [vmem:[%s199 + $0x98] sm:$0xff]
        %v220 = vld [vmem:[%s199 + $0xa0] sm:$0x3]
        %v221 = vld [vmem:[%s199 + $0xa8] sm:$0xff]
        %v222 = vld [vmem:[%s199 + $0xb0] sm:$0xff]
        %v223 = vld [vmem:[%s199 + $0xb8] sm:$0x3]
        %v224 = vld [vmem:[%s199 + $0xc0] sm:$0xff]
        %v225 = vld [vmem:[%s199 + $0xc8] sm:$0xff]
        %v226 = vld [vmem:[%s199 + $0xd0] sm:$0x3]
        %v227 = vld [vmem:[%s199 + $0xd8] sm:$0xff]
        %v228 = vld [vmem:[%s199 + $0xe0] sm:$0xff]
        %v229 = vld [vmem:[%s199 + $0xe8] sm:$0x3]
        %vm254 = vcmask 1046528
        %v255 = vrot.slane %v200, 1
        %v256 = vrot.slane %v201, 1
        %v257 = vsel %vm254, %v255, %v256
        %v258 = vrot.slane %v202, 1
        %v259 = vsel %vm254, %v256, %v258
        %v260 = vrot.slane %v203, 1
        %v261 = vrot.slane %v204, 1
        %v262 = vsel %vm254, %v260, %v261
        %v263 = vrot.slane %v205, 1
        %v264 = vsel %vm254, %v261, %v263
        %v265 = vrot.slane %v206, 1
        %v266 = vrot.slane %v207, 1
        %v267 = vsel %vm254, %v265, %v266
        %v268 = vrot.slane %v208, 1
        %v269 = vsel %vm254, %v266, %v268
        %v270 = vrot.slane %v209, 1
        %v271 = vrot.slane %v210, 1
        %v272 = vsel %vm254, %v270, %v271
        %v273 = vrot.slane %v211, 1
        %v274 = vsel %vm254, %v271, %v273
        %v275 = vrot.slane %v212, 1
        %v276 = vrot.slane %v213, 1
        %v277 = vsel %vm254, %v275, %v276
        %v278 = vrot.slane %v214, 1
        %v279 = vsel %vm254, %v276, %v278
        %v280 = vrot.slane %v215, 1
        %v281 = vrot.slane %v216, 1
        %v282 = vsel %vm254, %v280, %v281
        %v283 = vrot.slane %v217, 1
        %v284 = vsel %vm254, %v281, %v283
        %v285 = vrot.slane %v218, 1
        %v286 = vrot.slane %v219, 1
        %v287 = vsel %vm254, %v285, %v286
        %v288 = vrot.slane %v220, 1
        %v289 = vsel %vm254, %v286, %v288
        %v290 = vrot.slane %v221, 1
        %v291 = vrot.slane %v222, 1
        %v292 = vsel %vm254, %v290, %v291
        %v293 = vrot.slane %v223, 1
        %v294 = vsel %vm254, %v291, %v293
        %vm295 = vcmask 1045504
        %v296 = vrot.slane %v200, 2
        %v297 = vrot.slane %v201, 2
        %v298 = vsel %vm295, %v296, %v297
        %v299 = vrot.slane %v202, 2
        %v300 = vsel %vm295, %v297, %v299
        %v301 = vrot.slane %v203, 2
        %v302 = vrot.slane %v204, 2
        %v303 = vsel %vm295, %v301, %v302
        %v304 = vrot.slane %v205, 2
        %v305 = vsel %vm295, %v302, %v304
        %v306 = vrot.slane %v206, 2
        %v307 = vrot.slane %v207, 2
        %v308 = vsel %vm295, %v306, %v307
        %v309 = vrot.slane %v208, 2
        %v310 = vsel %vm295, %v307, %v309
        %v311 = vrot.slane %v209, 2
        %v312 = vrot.slane %v210, 2
        %v313 = vsel %vm295, %v311, %v312
        %v314 = vrot.slane %v211, 2
        %v315 = vsel %vm295, %v312, %v314
        %v316 = vrot.slane %v212, 2
        %v317 = vrot.slane %v213, 2
        %v318 = vsel %vm295, %v316, %v317
        %v319 = vrot.slane %v214, 2
        %v320 = vsel %vm295, %v317, %v319
        %v321 = vrot.slane %v215, 2
        %v322 = vrot.slane %v216, 2
        %v323 = vsel %vm295, %v321, %v322
        %v324 = vrot.slane %v217, 2
        %v325 = vsel %vm295, %v322, %v324
        %v326 = vrot.slane %v218, 2
        %v327 = vrot.slane %v219, 2
        %v328 = vsel %vm295, %v326, %v327
        %v329 = vrot.slane %v220, 2
        %v330 = vsel %vm295, %v327, %v329
        %v331 = vrot.slane %v221, 2
        %v332 = vrot.slane %v222, 2
        %v333 = vsel %vm295, %v331, %v332
        %v334 = vrot.slane %v223, 2
        %v335 = vsel %vm295, %v332, %v334
        %v339 = vrot.slane %v224, 1
        %v340 = vrot.slane %v225, 1
        %v341 = vsel %vm254, %v339, %v340
        %v342 = vrot.slane %v226, 1
        %v343 = vsel %vm254, %v340, %v342
        %v344 = vrot.slane %v224, 2
        %v345 = vrot.slane %v225, 2
        %v346 = vsel %vm295, %v344, %v345
        %v347 = vrot.slane %v226, 2
        %v348 = vsel %vm295, %v345, %v347
        %v352 = vrot.slane %v227, 1
        %v353 = vrot.slane %v228, 1
        %v354 = vsel %vm254, %v352, %v353
        %v355 = vrot.slane %v229, 1
        %v356 = vsel %vm254, %v353, %v355
        %v357 = vrot.slane %v227, 2
        %v358 = vrot.slane %v228, 2
        %v359 = vsel %vm295, %v357, %v358
        %v360 = vrot.slane %v229, 2
        %v361 = vsel %vm295, %v358, %v360
        %362 = vrot.lane.b32.xlu0 %v257, 4
        %v363 = vpop.permute.xlu0 %362
        %364 = vrot.lane.b32.xlu0 %v259, 4
        %v365 = vpop.permute.xlu0 %364
        %366 = vrot.lane.b32.xlu0 %v262, 4
        %v367 = vpop.permute.xlu0 %366
        %368 = vrot.lane.b32.xlu0 %v264, 4
        %v369 = vpop.permute.xlu0 %368
        %370 = vrot.lane.b32.xlu0 %v267, 4
        %v371 = vpop.permute.xlu0 %370
        %372 = vrot.lane.b32.xlu0 %v269, 4
        %v373 = vpop.permute.xlu0 %372
        %374 = vrot.lane.b32.xlu0 %v272, 4
        %v375 = vpop.permute.xlu0 %374
        %376 = vrot.lane.b32.xlu0 %v274, 4
        %v377 = vpop.permute.xlu0 %376
        %378 = vrot.lane.b32.xlu0 %v277, 4
        %v379 = vpop.permute.xlu0 %378
        %380 = vrot.lane.b32.xlu0 %v279, 4
        %v381 = vpop.permute.xlu0 %380
        %382 = vrot.lane.b32.xlu0 %v282, 4
        %v383 = vpop.permute.xlu0 %382
        %384 = vrot.lane.b32.xlu0 %v284, 4
        %v385 = vpop.permute.xlu0 %384
        %386 = vrot.lane.b32.xlu0 %v287, 4
        %v387 = vpop.permute.xlu0 %386
        %388 = vrot.lane.b32.xlu0 %v289, 4
        %v389 = vpop.permute.xlu0 %388
        %390 = vrot.lane.b32.xlu0 %v292, 4
        %v391 = vpop.permute.xlu0 %390
        %392 = vrot.lane.b32.xlu0 %v294, 4
        %v393 = vpop.permute.xlu0 %392
        %410 = vrot.lane.b32.xlu0 %v298, 8
        %v411 = vpop.permute.xlu0 %410
        %412 = vrot.lane.b32.xlu0 %v300, 8
        %v413 = vpop.permute.xlu0 %412
        %414 = vrot.lane.b32.xlu0 %v303, 8
        %v415 = vpop.permute.xlu0 %414
        %416 = vrot.lane.b32.xlu0 %v305, 8
        %v417 = vpop.permute.xlu0 %416
        %418 = vrot.lane.b32.xlu0 %v308, 8
        %v419 = vpop.permute.xlu0 %418
        %420 = vrot.lane.b32.xlu0 %v310, 8
        %v421 = vpop.permute.xlu0 %420
        %422 = vrot.lane.b32.xlu0 %v313, 8
        %v423 = vpop.permute.xlu0 %422
        %424 = vrot.lane.b32.xlu0 %v315, 8
        %v425 = vpop.permute.xlu0 %424
        %426 = vrot.lane.b32.xlu0 %v318, 8
        %v427 = vpop.permute.xlu0 %426
        %428 = vrot.lane.b32.xlu0 %v320, 8
        %v429 = vpop.permute.xlu0 %428
        %430 = vrot.lane.b32.xlu0 %v323, 8
        %v431 = vpop.permute.xlu0 %430
        %432 = vrot.lane.b32.xlu0 %v325, 8
        %v433 = vpop.permute.xlu0 %432
        %434 = vrot.lane.b32.xlu0 %v328, 8
        %v435 = vpop.permute.xlu0 %434
        %436 = vrot.lane.b32.xlu0 %v330, 8
        %v437 = vpop.permute.xlu0 %436
        %438 = vrot.lane.b32.xlu0 %v333, 8
        %v439 = vpop.permute.xlu0 %438
        %440 = vrot.lane.b32.xlu0 %v335, 8
        %v441 = vpop.permute.xlu0 %440
        %458 = vrot.lane.b32.xlu0 %v203, 12
        %v459 = vpop.permute.xlu0 %458
        %460 = vrot.lane.b32.xlu0 %v204, 12
        %v461 = vpop.permute.xlu0 %460
        %462 = vrot.lane.b32.xlu0 %v206, 12
        %v463 = vpop.permute.xlu0 %462
        %464 = vrot.lane.b32.xlu0 %v207, 12
        %v465 = vpop.permute.xlu0 %464
        %466 = vrot.lane.b32.xlu0 %v209, 12
        %v467 = vpop.permute.xlu0 %466
        %468 = vrot.lane.b32.xlu0 %v210, 12
        %v469 = vpop.permute.xlu0 %468
        %470 = vrot.lane.b32.xlu0 %v212, 12
        %v471 = vpop.permute.xlu0 %470
        %472 = vrot.lane.b32.xlu0 %v213, 12
        %v473 = vpop.permute.xlu0 %472
        %474 = vrot.lane.b32.xlu0 %v215, 12
        %v475 = vpop.permute.xlu0 %474
        %476 = vrot.lane.b32.xlu0 %v216, 12
        %v477 = vpop.permute.xlu0 %476
        %478 = vrot.lane.b32.xlu0 %v218, 12
        %v479 = vpop.permute.xlu0 %478
        %480 = vrot.lane.b32.xlu0 %v219, 12
        %v481 = vpop.permute.xlu0 %480
        %482 = vrot.lane.b32.xlu0 %v221, 12
        %v483 = vpop.permute.xlu0 %482
        %484 = vrot.lane.b32.xlu0 %v222, 12
        %v485 = vpop.permute.xlu0 %484
        %486 = vrot.lane.b32.xlu0 %v224, 12
        %v487 = vpop.permute.xlu0 %486
        %488 = vrot.lane.b32.xlu0 %v225, 12
        %v489 = vpop.permute.xlu0 %488
        %506 = vrot.lane.b32.xlu0 %v262, 16
        %v507 = vpop.permute.xlu0 %506
        %508 = vrot.lane.b32.xlu0 %v264, 16
        %v509 = vpop.permute.xlu0 %508
        %510 = vrot.lane.b32.xlu0 %v267, 16
        %v511 = vpop.permute.xlu0 %510
        %512 = vrot.lane.b32.xlu0 %v269, 16
        %v513 = vpop.permute.xlu0 %512
        %514 = vrot.lane.b32.xlu0 %v272, 16
        %v515 = vpop.permute.xlu0 %514
        %516 = vrot.lane.b32.xlu0 %v274, 16
        %v517 = vpop.permute.xlu0 %516
        %518 = vrot.lane.b32.xlu0 %v277, 16
        %v519 = vpop.permute.xlu0 %518
        %520 = vrot.lane.b32.xlu0 %v279, 16
        %v521 = vpop.permute.xlu0 %520
        %522 = vrot.lane.b32.xlu0 %v282, 16
        %v523 = vpop.permute.xlu0 %522
        %524 = vrot.lane.b32.xlu0 %v284, 16
        %v525 = vpop.permute.xlu0 %524
        %526 = vrot.lane.b32.xlu0 %v287, 16
        %v527 = vpop.permute.xlu0 %526
        %528 = vrot.lane.b32.xlu0 %v289, 16
        %v529 = vpop.permute.xlu0 %528
        %530 = vrot.lane.b32.xlu0 %v292, 16
        %v531 = vpop.permute.xlu0 %530
        %532 = vrot.lane.b32.xlu0 %v294, 16
        %v533 = vpop.permute.xlu0 %532
        %534 = vrot.lane.b32.xlu0 %v341, 16
        %v535 = vpop.permute.xlu0 %534
        %536 = vrot.lane.b32.xlu0 %v343, 16
        %v537 = vpop.permute.xlu0 %536
        %554 = vrot.lane.b32.xlu0 %v303, 20
        %v555 = vpop.permute.xlu0 %554
        %556 = vrot.lane.b32.xlu0 %v305, 20
        %v557 = vpop.permute.xlu0 %556
        %558 = vrot.lane.b32.xlu0 %v308, 20
        %v559 = vpop.permute.xlu0 %558
        %560 = vrot.lane.b32.xlu0 %v310, 20
        %v561 = vpop.permute.xlu0 %560
        %562 = vrot.lane.b32.xlu0 %v313, 20
        %v563 = vpop.permute.xlu0 %562
        %564 = vrot.lane.b32.xlu0 %v315, 20
        %v565 = vpop.permute.xlu0 %564
        %566 = vrot.lane.b32.xlu0 %v318, 20
        %v567 = vpop.permute.xlu0 %566
        %568 = vrot.lane.b32.xlu0 %v320, 20
        %v569 = vpop.permute.xlu0 %568
        %570 = vrot.lane.b32.xlu0 %v323, 20
        %v571 = vpop.permute.xlu0 %570
        %572 = vrot.lane.b32.xlu0 %v325, 20
        %v573 = vpop.permute.xlu0 %572
        %574 = vrot.lane.b32.xlu0 %v328, 20
        %v575 = vpop.permute.xlu0 %574
        %576 = vrot.lane.b32.xlu0 %v330, 20
        %v577 = vpop.permute.xlu0 %576
        %578 = vrot.lane.b32.xlu0 %v333, 20
        %v579 = vpop.permute.xlu0 %578
        %580 = vrot.lane.b32.xlu0 %v335, 20
        %v581 = vpop.permute.xlu0 %580
        %582 = vrot.lane.b32.xlu0 %v346, 20
        %v583 = vpop.permute.xlu0 %582
        %584 = vrot.lane.b32.xlu0 %v348, 20
        %v585 = vpop.permute.xlu0 %584
        %602 = vrot.lane.b32.xlu0 %v206, 24
        %v603 = vpop.permute.xlu0 %602
        %604 = vrot.lane.b32.xlu0 %v207, 24
        %v605 = vpop.permute.xlu0 %604
        %606 = vrot.lane.b32.xlu0 %v209, 24
        %v607 = vpop.permute.xlu0 %606
        %608 = vrot.lane.b32.xlu0 %v210, 24
        %v609 = vpop.permute.xlu0 %608
        %610 = vrot.lane.b32.xlu0 %v212, 24
        %v611 = vpop.permute.xlu0 %610
        %612 = vrot.lane.b32.xlu0 %v213, 24
        %v613 = vpop.permute.xlu0 %612
        %614 = vrot.lane.b32.xlu0 %v215, 24
        %v615 = vpop.permute.xlu0 %614
        %616 = vrot.lane.b32.xlu0 %v216, 24
        %v617 = vpop.permute.xlu0 %616
        %618 = vrot.lane.b32.xlu0 %v218, 24
        %v619 = vpop.permute.xlu0 %618
        %620 = vrot.lane.b32.xlu0 %v219, 24
        %v621 = vpop.permute.xlu0 %620
        %622 = vrot.lane.b32.xlu0 %v221, 24
        %v623 = vpop.permute.xlu0 %622
        %624 = vrot.lane.b32.xlu0 %v222, 24
        %v625 = vpop.permute.xlu0 %624
        %626 = vrot.lane.b32.xlu0 %v224, 24
        %v627 = vpop.permute.xlu0 %626
        %628 = vrot.lane.b32.xlu0 %v225, 24
        %v629 = vpop.permute.xlu0 %628
        %630 = vrot.lane.b32.xlu0 %v227, 24
        %v631 = vpop.permute.xlu0 %630
        %632 = vrot.lane.b32.xlu0 %v228, 24
        %v633 = vpop.permute.xlu0 %632
        %650 = vrot.lane.b32.xlu0 %v267, 28
        %v651 = vpop.permute.xlu0 %650
        %652 = vrot.lane.b32.xlu0 %v269, 28
        %v653 = vpop.permute.xlu0 %652
        %654 = vrot.lane.b32.xlu0 %v272, 28
        %v655 = vpop.permute.xlu0 %654
        %656 = vrot.lane.b32.xlu0 %v274, 28
        %v657 = vpop.permute.xlu0 %656
        %658 = vrot.lane.b32.xlu0 %v277, 28
        %v659 = vpop.permute.xlu0 %658
        %660 = vrot.lane.b32.xlu0 %v279, 28
        %v661 = vpop.permute.xlu0 %660
        %662 = vrot.lane.b32.xlu0 %v282, 28
        %v663 = vpop.permute.xlu0 %662
        %664 = vrot.lane.b32.xlu0 %v284, 28
        %v665 = vpop.permute.xlu0 %664
        %666 = vrot.lane.b32.xlu0 %v287, 28
        %v667 = vpop.permute.xlu0 %666
        %668 = vrot.lane.b32.xlu0 %v289, 28
        %v669 = vpop.permute.xlu0 %668
        %670 = vrot.lane.b32.xlu0 %v292, 28
        %v671 = vpop.permute.xlu0 %670
        %672 = vrot.lane.b32.xlu0 %v294, 28
        %v673 = vpop.permute.xlu0 %672
        %674 = vrot.lane.b32.xlu0 %v341, 28
        %v675 = vpop.permute.xlu0 %674
        %676 = vrot.lane.b32.xlu0 %v343, 28
        %v677 = vpop.permute.xlu0 %676
        %678 = vrot.lane.b32.xlu0 %v354, 28
        %v679 = vpop.permute.xlu0 %678
        %680 = vrot.lane.b32.xlu0 %v356, 28
        %v681 = vpop.permute.xlu0 %680
        %698 = vrot.lane.b32.xlu0 %v308, 32
        %v699 = vpop.permute.xlu0 %698
        %700 = vrot.lane.b32.xlu0 %v310, 32
        %v701 = vpop.permute.xlu0 %700
        %702 = vrot.lane.b32.xlu0 %v313, 32
        %v703 = vpop.permute.xlu0 %702
        %704 = vrot.lane.b32.xlu0 %v315, 32
        %v705 = vpop.permute.xlu0 %704
        %706 = vrot.lane.b32.xlu0 %v318, 32
        %v707 = vpop.permute.xlu0 %706
        %708 = vrot.lane.b32.xlu0 %v320, 32
        %v709 = vpop.permute.xlu0 %708
        %710 = vrot.lane.b32.xlu0 %v323, 32
        %v711 = vpop.permute.xlu0 %710
        %712 = vrot.lane.b32.xlu0 %v325, 32
        %v713 = vpop.permute.xlu0 %712
        %714 = vrot.lane.b32.xlu0 %v328, 32
        %v715 = vpop.permute.xlu0 %714
        %716 = vrot.lane.b32.xlu0 %v330, 32
        %v717 = vpop.permute.xlu0 %716
        %718 = vrot.lane.b32.xlu0 %v333, 32
        %v719 = vpop.permute.xlu0 %718
        %720 = vrot.lane.b32.xlu0 %v335, 32
        %v721 = vpop.permute.xlu0 %720
        %722 = vrot.lane.b32.xlu0 %v346, 32
        %v723 = vpop.permute.xlu0 %722
        %724 = vrot.lane.b32.xlu0 %v348, 32
        %v725 = vpop.permute.xlu0 %724
        %726 = vrot.lane.b32.xlu0 %v359, 32
        %v727 = vpop.permute.xlu0 %726
        %728 = vrot.lane.b32.xlu0 %v361, 32
        %v729 = vpop.permute.xlu0 %728
        %vm746 = vcmask 31744
        %v747 = vsel %vm746, %v200, %v363
        %v748 = vsel %vm746, %v201, %v365
        %v749 = vsel %vm746, %v203, %v367
        %v750 = vsel %vm746, %v204, %v369
        %v751 = vsel %vm746, %v206, %v371
        %v752 = vsel %vm746, %v207, %v373
        %v753 = vsel %vm746, %v209, %v375
        %v754 = vsel %vm746, %v210, %v377
        %v755 = vsel %vm746, %v212, %v379
        %v756 = vsel %vm746, %v213, %v381
        %v757 = vsel %vm746, %v215, %v383
        %v758 = vsel %vm746, %v216, %v385
        %v759 = vsel %vm746, %v218, %v387
        %v760 = vsel %vm746, %v219, %v389
        %v761 = vsel %vm746, %v221, %v391
        %v762 = vsel %vm746, %v222, %v393
        %vm763 = vcmask 64512
        %v764 = vsel %vm763, %v747, %v411
        %v765 = vsel %vm763, %v748, %v413
        %v766 = vsel %vm763, %v749, %v415
        %v767 = vsel %vm763, %v750, %v417
        %v768 = vsel %vm763, %v751, %v419
        %v769 = vsel %vm763, %v752, %v421
        %v770 = vsel %vm763, %v753, %v423
        %v771 = vsel %vm763, %v754, %v425
        %v772 = vsel %vm763, %v755, %v427
        %v773 = vsel %vm763, %v756, %v429
        %v774 = vsel %vm763, %v757, %v431
        %v775 = vsel %vm763, %v758, %v433
        %v776 = vsel %vm763, %v759, %v435
        %v777 = vsel %vm763, %v760, %v437
        %v778 = vsel %vm763, %v761, %v439
        %v779 = vsel %vm763, %v762, %v441
        %vm780 = vcmask 97280
        %v781 = vsel %vm780, %v764, %v459
        %v782 = vsel %vm780, %v765, %v461
        %v783 = vsel %vm780, %v766, %v463
        %v784 = vsel %vm780, %v767, %v465
        %v785 = vsel %vm780, %v768, %v467
        %v786 = vsel %vm780, %v769, %v469
        %v787 = vsel %vm780, %v770, %v471
        %v788 = vsel %vm780, %v771, %v473
        %v789 = vsel %vm780, %v772, %v475
        %v790 = vsel %vm780, %v773, %v477
        %v791 = vsel %vm780, %v774, %v479
        %v792 = vsel %vm780, %v775, %v481
        %v793 = vsel %vm780, %v776, %v483
        %v794 = vsel %vm780, %v777, %v485
        %v795 = vsel %vm780, %v778, %v487
        %v796 = vsel %vm780, %v779, %v489
        %vm797 = vcmask 130048
        %v798 = vsel %vm797, %v781, %v507
        %v799 = vsel %vm797, %v782, %v509
        %v800 = vsel %vm797, %v783, %v511
        %v801 = vsel %vm797, %v784, %v513
        %v802 = vsel %vm797, %v785, %v515
        %v803 = vsel %vm797, %v786, %v517
        %v804 = vsel %vm797, %v787, %v519
        %v805 = vsel %vm797, %v788, %v521
        %v806 = vsel %vm797, %v789, %v523
        %v807 = vsel %vm797, %v790, %v525
        %v808 = vsel %vm797, %v791, %v527
        %v809 = vsel %vm797, %v792, %v529
        %v810 = vsel %vm797, %v793, %v531
        %v811 = vsel %vm797, %v794, %v533
        %v812 = vsel %vm797, %v795, %v535
        %v813 = vsel %vm797, %v796, %v537
        %vm814 = vcmask 162816
        %v815 = vsel %vm814, %v798, %v555
        %v816 = vsel %vm814, %v799, %v557
        %v817 = vsel %vm814, %v800, %v559
        %v818 = vsel %vm814, %v801, %v561
        %v819 = vsel %vm814, %v802, %v563
        %v820 = vsel %vm814, %v803, %v565
        %v821 = vsel %vm814, %v804, %v567
        %v822 = vsel %vm814, %v805, %v569
        %v823 = vsel %vm814, %v806, %v571
        %v824 = vsel %vm814, %v807, %v573
        %v825 = vsel %vm814, %v808, %v575
        %v826 = vsel %vm814, %v809, %v577
        %v827 = vsel %vm814, %v810, %v579
        %v828 = vsel %vm814, %v811, %v581
        %v829 = vsel %vm814, %v812, %v583
        %v830 = vsel %vm814, %v813, %v585
        %vm831 = vcmask 195584
        %v832 = vsel %vm831, %v815, %v603
        %v833 = vsel %vm831, %v816, %v605
        %v834 = vsel %vm831, %v817, %v607
        %v835 = vsel %vm831, %v818, %v609
        %v836 = vsel %vm831, %v819, %v611
        %v837 = vsel %vm831, %v820, %v613
        %v838 = vsel %vm831, %v821, %v615
        %v839 = vsel %vm831, %v822, %v617
        %v840 = vsel %vm831, %v823, %v619
        %v841 = vsel %vm831, %v824, %v621
        %v842 = vsel %vm831, %v825, %v623
        %v843 = vsel %vm831, %v826, %v625
        %v844 = vsel %vm831, %v827, %v627
        %v845 = vsel %vm831, %v828, %v629
        %v846 = vsel %vm831, %v829, %v631
        %v847 = vsel %vm831, %v830, %v633
        %vm848 = vcmask 228352
        %v849 = vsel %vm848, %v832, %v651
        %v850 = vsel %vm848, %v833, %v653
        %v851 = vsel %vm848, %v834, %v655
        %v852 = vsel %vm848, %v835, %v657
        %v853 = vsel %vm848, %v836, %v659
        %v854 = vsel %vm848, %v837, %v661
        %v855 = vsel %vm848, %v838, %v663
        %v856 = vsel %vm848, %v839, %v665
        %v857 = vsel %vm848, %v840, %v667
        %v858 = vsel %vm848, %v841, %v669
        %v859 = vsel %vm848, %v842, %v671
        %v860 = vsel %vm848, %v843, %v673
        %v861 = vsel %vm848, %v844, %v675
        %v862 = vsel %vm848, %v845, %v677
        %v863 = vsel %vm848, %v846, %v679
        %v864 = vsel %vm848, %v847, %v681
        %vm865 = vcmask 261120
        %v866 = vsel %vm865, %v849, %v699
        %v867 = vsel %vm865, %v850, %v701
        %v868 = vsel %vm865, %v851, %v703
        %v869 = vsel %vm865, %v852, %v705
        %v870 = vsel %vm865, %v853, %v707
        %v871 = vsel %vm865, %v854, %v709
        %v872 = vsel %vm865, %v855, %v711
        %v873 = vsel %vm865, %v856, %v713
        %v874 = vsel %vm865, %v857, %v715
        %v875 = vsel %vm865, %v858, %v717
        %v876 = vsel %vm865, %v859, %v719
        %v877 = vsel %vm865, %v860, %v721
        %v878 = vsel %vm865, %v861, %v723
        %v879 = vsel %vm865, %v862, %v725
        %v880 = vsel %vm865, %v863, %v727
        %v881 = vsel %vm865, %v864, %v729
        %v882 = vpack.c.bf16 %v867, %v866
        %v883 = vpack.c.bf16 %v869, %v868
        %v884 = vpack.c.bf16 %v871, %v870
        %v885 = vpack.c.bf16 %v873, %v872
        %v886 = vpack.c.bf16 %v875, %v874
        %v887 = vpack.c.bf16 %v877, %v876
        %v888 = vpack.c.bf16 %v879, %v878
        %v889 = vpack.c.bf16 %v881, %v880
        %v890 = vld [vmem:[%s1] sm:$0xf]
        %v891 = vld [vmem:[%s1 + $0x4] sm:$0xf]
        %v892 = vld [vmem:[%s1 + $0x8] sm:$0xf]
        %v893 = vld [vmem:[%s1 + $0xc] sm:$0xf]
        %v894 = vld [vmem:[%s1 + $0x10] sm:$0x3]
        %v900 = vunpack.c.l.b16 %v890
        %v901 = vunpack.c.l.b16 %v891
        %v902 = vunpack.c.l.b16 %v892
        %v903 = vunpack.c.l.b16 %v893
        %v904 = vunpack.c.l.b16 %v894
        %v905 = vpack.c.b16 %v901, %v900
        %v906 = vpack.c.b16 %v903, %v902
        %v907 = vpack.c.b16 %v904, %v904
        %vm910 = vcmask 293888
        %v912 = vsel %vm910, %v882, 0
        %v915 = vsel %vm910, %v883, 0
        %v918 = vsel %vm910, %v884, 0
        %v921 = vsel %vm910, %v885, 0
        %v924 = vsel %vm910, %v886, 0
        %v927 = vsel %vm910, %v887, 0
        %v930 = vsel %vm910, %v888, 0
        %v933 = vsel %vm910, %v889, 0
        %vm935 = vcmask 1041408
        %v937 = vsel %vm935, %v907, 0
        %939 = vmatpush.bf16.msra.mxu0 0
        %940 = vmatpush.bf16.msra.mxu0 0
        %941 = vmatpush.bf16.msra.mxu0 0
        %942 = vmatpush.bf16.msra.mxu0 0
        %943 = vmatpush.bf16.msra.mxu0 0
        %944 = vmatpush.bf16.msra.mxu0 %v937
        %945 = vmatpush.bf16.msra.mxu0 %v906
        %946 = vmatpush.bf16.msra.mxu0 %v905
        %947 = vmatmul.bf16.gmra.mxu0 %v912
        %v948 = vpop.f32.mrf.mxu0
        %v949 = vadd.f32 0.0, %v948
        %v950 = vpop.f32.mrf.mxu0
        %v951 = vadd.f32 0.0, %v950
        %952 = vmatmul.bf16.gmra.mxu0 %v915
        %v953 = vpop.f32.mrf.mxu0
        %v954 = vadd.f32 0.0, %v953
        %v955 = vpop.f32.mrf.mxu0
        %v956 = vadd.f32 0.0, %v955
        %957 = vmatmul.bf16.gmra.mxu0 %v918
        %v958 = vpop.f32.mrf.mxu0
        %v959 = vadd.f32 0.0, %v958
        %v960 = vpop.f32.mrf.mxu0
        %v961 = vadd.f32 0.0, %v960
        %962 = vmatmul.bf16.gmra.mxu0 %v921
        %v963 = vpop.f32.mrf.mxu0
        %v964 = vadd.f32 0.0, %v963
        %v965 = vpop.f32.mrf.mxu0
        %v966 = vadd.f32 0.0, %v965
        %967 = vmatmul.bf16.gmra.mxu0 %v924
        %v968 = vpop.f32.mrf.mxu0
        %v969 = vadd.f32 0.0, %v968
        %v970 = vpop.f32.mrf.mxu0
        %v971 = vadd.f32 0.0, %v970
        %972 = vmatmul.bf16.gmra.mxu0 %v927
        %v973 = vpop.f32.mrf.mxu0
        %v974 = vadd.f32 0.0, %v973
        %v975 = vpop.f32.mrf.mxu0
        %v976 = vadd.f32 0.0, %v975
        %977 = vmatmul.bf16.gmra.mxu0 %v930
        %v978 = vpop.f32.mrf.mxu0
        %v979 = vadd.f32 0.0, %v978
        %v980 = vpop.f32.mrf.mxu0
        %v981 = vadd.f32 0.0, %v980
        %982 = vmatmul.bf16.gmra.mxu0 %v933
        %v983 = vpop.f32.mrf.mxu0
        %v984 = vadd.f32 0.0, %v983
        %v985 = vpop.f32.mrf.mxu0
        %v986 = vadd.f32 0.0, %v985
        %987 = vdwg.mxu0
        %v988 = vsel %vm763, %v949, 0.0
        %v989 = vsel %vm763, %v951, 0.0
        %v990 = vadd.f32 %v988, %v989
        %v991 = vsel %vm763, %v954, 0.0
        %v992 = vadd.f32 %v990, %v991
        %v993 = vsel %vm763, %v956, 0.0
        %v994 = vadd.f32 %v992, %v993
        %v995 = vsel %vm763, %v959, 0.0
        %v996 = vadd.f32 %v994, %v995
        %v997 = vsel %vm763, %v961, 0.0
        %v998 = vadd.f32 %v996, %v997
        %v999 = vsel %vm763, %v964, 0.0
        %v1000 = vadd.f32 %v998, %v999
        %v1001 = vsel %vm763, %v966, 0.0
        %v1002 = vadd.f32 %v1000, %v1001
        %v1003 = vsel %vm763, %v969, 0.0
        %v1004 = vadd.f32 %v1002, %v1003
        %v1005 = vsel %vm763, %v971, 0.0
        %v1006 = vadd.f32 %v1004, %v1005
        %v1007 = vsel %vm763, %v974, 0.0
        %v1008 = vadd.f32 %v1006, %v1007
        %v1009 = vsel %vm763, %v976, 0.0
        %v1010 = vadd.f32 %v1008, %v1009
        %v1011 = vsel %vm763, %v979, 0.0
        %v1012 = vadd.f32 %v1010, %v1011
        %v1013 = vsel %vm763, %v981, 0.0
        %v1014 = vadd.f32 %v1012, %v1013
        %v1015 = vsel %vm763, %v984, 0.0
        %v1016 = vadd.f32 %v1014, %v1015
        %v1017 = vsel %vm763, %v986, 0.0
        %v1018 = vadd.f32 %v1016, %v1017
        %v1019 = vrot.slane %v1018, 4
        %v1020 = vadd.f32 %v1018, %v1019
        %v1021 = vrot.slane %v1020, 2
        %v1022 = vadd.f32 %v1020, %v1021
        %v1023 = vrot.slane %v1022, 1
        %v1024 = vadd.f32 %v1022, %v1023
        %v1025 = vmul.f32 %v949, %v949
        %v1026 = vmul.f32 %v951, %v951
        %v1027 = vmul.f32 %v954, %v954
        %v1028 = vmul.f32 %v956, %v956
        %v1029 = vmul.f32 %v959, %v959
        %v1030 = vmul.f32 %v961, %v961
        %v1031 = vmul.f32 %v964, %v964
        %v1032 = vmul.f32 %v966, %v966
        %v1033 = vmul.f32 %v969, %v969
        %v1034 = vmul.f32 %v971, %v971
        %v1035 = vmul.f32 %v974, %v974
        %v1036 = vmul.f32 %v976, %v976
        %v1037 = vmul.f32 %v979, %v979
        %v1038 = vmul.f32 %v981, %v981
        %v1039 = vmul.f32 %v984, %v984
        %v1040 = vmul.f32 %v986, %v986
        %v1041 = vsel %vm763, %v1025, 0.0
        %v1042 = vsel %vm763, %v1026, 0.0
        %v1043 = vadd.f32 %v1041, %v1042
        %v1044 = vsel %vm763, %v1027, 0.0
        %v1045 = vadd.f32 %v1043, %v1044
        %v1046 = vsel %vm763, %v1028, 0.0
        %v1047 = vadd.f32 %v1045, %v1046
        %v1048 = vsel %vm763, %v1029, 0.0
        %v1049 = vadd.f32 %v1047, %v1048
        %v1050 = vsel %vm763, %v1030, 0.0
        %v1051 = vadd.f32 %v1049, %v1050
        %v1052 = vsel %vm763, %v1031, 0.0
        %v1053 = vadd.f32 %v1051, %v1052
        %v1054 = vsel %vm763, %v1032, 0.0
        %v1055 = vadd.f32 %v1053, %v1054
        %v1056 = vsel %vm763, %v1033, 0.0
        %v1057 = vadd.f32 %v1055, %v1056
        %v1058 = vsel %vm763, %v1034, 0.0
        %v1059 = vadd.f32 %v1057, %v1058
        %v1060 = vsel %vm763, %v1035, 0.0
        %v1061 = vadd.f32 %v1059, %v1060
        %v1062 = vsel %vm763, %v1036, 0.0
        %v1063 = vadd.f32 %v1061, %v1062
        %v1064 = vsel %vm763, %v1037, 0.0
        %v1065 = vadd.f32 %v1063, %v1064
        %v1066 = vsel %vm763, %v1038, 0.0
        %v1067 = vadd.f32 %v1065, %v1066
        %v1068 = vsel %vm763, %v1039, 0.0
        %v1069 = vadd.f32 %v1067, %v1068
        %v1070 = vsel %vm763, %v1040, 0.0
        %v1071 = vadd.f32 %v1069, %v1070
        %v1072 = vrot.slane %v1071, 4
        %v1073 = vadd.f32 %v1071, %v1072
        %v1074 = vrot.slane %v1073, 2
        %v1075 = vadd.f32 %v1073, %v1074
        %v1076 = vrot.slane %v1075, 1
        %v1077 = vadd.f32 %v1075, %v1076
        %vm1078 = vcmask 1040384
        %v1079 = vsel %vm1078, %v1024, %v1077
        %vm1080 = vcmask 58368
        %1081 = vst.msk [vmem:[%s190] sm:$0x3] %vm1080, %v1079
        %1082 = vxpose.xlu0.b32.start [1/16] %v949, 128
        %1083 = vxpose.xlu0.b32.cont [2/16] %v951, 128
        %1084 = vxpose.xlu0.b32.cont [3/16] %v954, 128
        %1085 = vxpose.xlu0.b32.cont [4/16] %v956, 128
        %1086 = vxpose.xlu0.b32.cont [5/16] %v959, 128
        %1087 = vxpose.xlu0.b32.cont [6/16] %v961, 128
        %1088 = vxpose.xlu0.b32.cont [7/16] %v964, 128
        %1089 = vxpose.xlu0.b32.cont [8/16] %v966, 128
        %1090 = vxpose.xlu0.b32.cont [9/16] %v969, 128
        %1091 = vxpose.xlu0.b32.cont [10/16] %v971, 128
        %1092 = vxpose.xlu0.b32.cont [11/16] %v974, 128
        %1093 = vxpose.xlu0.b32.cont [12/16] %v976, 128
        %1094 = vxpose.xlu0.b32.cont [13/16] %v979, 128
        %1095 = vxpose.xlu0.b32.cont [14/16] %v981, 128
        %1096 = vxpose.xlu0.b32.cont [15/16] %v984, 128
        %1097 = vxpose.xlu0.b32.end [16/16] %v986, 128
        %v1098 = vpop.trf.xlu0
        %v1099 = vpop.trf.xlu0
        %v1100 = vpop.trf.xlu0
        %v1101 = vpop.trf.xlu0
        %v1102 = vpop.trf.xlu0
        %v1103 = vpop.trf.xlu0
        %v1104 = vpop.trf.xlu0
        %v1105 = vpop.trf.xlu0
        %v1106 = vpop.trf.xlu0
        %v1107 = vpop.trf.xlu0
        %v1108 = vpop.trf.xlu0
        %v1109 = vpop.trf.xlu0
        %v1110 = vpop.trf.xlu0
        %v1111 = vpop.trf.xlu0
        %v1112 = vpop.trf.xlu0
        %v1113 = vpop.trf.xlu0
        %v1114 = vpack.c.bf16 %v1098, %v1098
        %1115 = vst [vmem:[%s183] sm:$0xf] %v1114
        %s1116 = sand.u32 %s90, 1
        %s1117 = scalar_lea.sflag [#allocation3], %s1116
        %s1118 = sand.u32 %s90, 1
        %s1119 = smul.addr %s1118, 4
        %s1120 = scalar_lea.vmem [#allocation2], %s1119
        %s1121 = sand.u32 %s118, 1
        %s1122 = scalar_lea.sflag [#allocation5], %s1121
        %s1123 = sand.u32 %s118, 1
        %s1124 = smul.addr %s1123, 2
        %s1125 = scalar_lea.vmem [#allocation4], %s1124
        // Predicated region
        $region29: #{tpu_custom_call.1} parent=27 // pred_check
          %p1126 = pneg %p100
        $region30: #{tpu_custom_call.1} parent=27 // pred_check_branch
          %1128 = sbr.rel (%p1126) target = $region32
        $region31: #{tpu_custom_call.1} parent=27 // pred_region
          %1130 = vsyncadd %s1117, 0
          %s1131 = smul.addr %s25, 2
          %s1132 = sadd.s32 %s26, %s1131
          %s1133 = smul.addr %s1132, 4
          %s1134 = scalar_lea.hbm %s2, %s1133
          %s1136 = sshll.u32 %s1120, 4
          %s1137 = int_to_ptr.vmem [resolvable:$true] %s1136
          %s1138 = sshll.u32 %s1134, 4
          %s1139 = int_to_ptr.hbm [resolvable:$true] %s1138
          %1141 = dma.vmem_to_hbm [thread:$0]  %s1137, 64, %s1139, %s1117
        $region32: #{tpu_custom_call.1} parent=27 // pred_fallthru
          _
        // Predicated region
        $region33: #{tpu_custom_call.1} parent=27 // pred_check
          %p1142 = pneg %p128
        $region34: #{tpu_custom_call.1} parent=27 // pred_check_branch
          %1144 = sbr.rel (%p1142) target = $region36
        $region35: #{tpu_custom_call.1} parent=27 // pred_region
          %1146 = vsyncadd %s1122, 0
          %s1147 = smul.addr %s25, 2
          %s1148 = sadd.s32 %s26, %s1147
          %s1149 = smul.addr %s1148, 2
          %s1150 = scalar_lea.hbm %s3, %s1149
          %s1152 = sshll.u32 %s1125, 4
          %s1153 = int_to_ptr.vmem [resolvable:$true] %s1152
          %s1154 = sshll.u32 %s1150, 4
          %s1155 = int_to_ptr.hbm [resolvable:$true] %s1154
          %1157 = dma.vmem_to_hbm [thread:$0]  %s1153, 32, %s1155, %s1122
        $region36: #{tpu_custom_call.1} parent=27 // pred_fallthru
          _
      $region28: #{tpu_custom_call.1} parent=5 // pred_fallthru
        _
      %p1158 = scmp.le.s32.totalorder 2, %s16
      // Predicated region
      $region37: #{tpu_custom_call.1} parent=5 // pred_check
        %p1159 = pneg %p1158
      $region38: #{tpu_custom_call.1} parent=5 // pred_check_branch
        %1161 = sbr.rel (%p1159) target = $region40
      $region39: #{tpu_custom_call.1} parent=5 // pred_region
        %s1162 = ssub.s32 %s16, 2
        // Predicated region
        $region41: #{tpu_custom_call.1} parent=39 // pred_check
          %p1163 = pneg %p106
        $region42: #{tpu_custom_call.1} parent=39 // pred_check_branch
          %1165 = sbr.rel (%p1163) target = $region44
        $region43: #{tpu_custom_call.1} parent=39 // pred_region
          %s1166 = sand.u32 %s91, 1
          %s1167 = scalar_lea.sflag [#allocation3], %s1166
          %s1168 = sand.u32 %s91, 1
          %s1169 = smul.addr %s1168, 4
          %s1170 = scalar_lea.vmem [#allocation2], %s1169
          %1172 = dma.done %s1167, 64
        $region44: #{tpu_custom_call.1} parent=39 // pred_fallthru
          _
        // Predicated region
        $region45: #{tpu_custom_call.1} parent=39 // pred_check
          %p1173 = pneg %p134
        $region46: #{tpu_custom_call.1} parent=39 // pred_check_branch
          %1175 = sbr.rel (%p1173) target = $region48
        $region47: #{tpu_custom_call.1} parent=39 // pred_region
          %s1176 = sand.u32 %s119, 1
          %s1177 = scalar_lea.sflag [#allocation5], %s1176
          %s1178 = sand.u32 %s119, 1
          %s1179 = smul.addr %s1178, 2
          %s1180 = scalar_lea.vmem [#allocation4], %s1179
          %1182 = dma.done %s1177, 32
        $region48: #{tpu_custom_call.1} parent=39 // pred_fallthru
          _
      $region40: #{tpu_custom_call.1} parent=5 // pred_fallthru
        _
    $region6: #{tpu_custom_call.1} parent=1 // loop_footer
      %s20 = sadd.s32 1, %s16
    $region7: #{tpu_custom_call.1} parent=1 // loop_footer_branch
      %15 = sbr.rel target = $region3
    $region8: #{tpu_custom_call.1} parent=1 // loop_exit
      _
    %1183 = vsyncpa [#allocation3], 1
    %s1184 = scalar_lea.sflag [#allocation3], 1
    %1185 = vsyncpa %s1184, 1
    %1186 = vsyncpa [#allocation5], 1
    %s1187 = scalar_lea.sflag [#allocation5], 1
    %1188 = vsyncpa %s1187, 1

</llo_original>
